<compile_context>
chip_gen: v6e
topology: v6e:2x2x1
jax: 0.10.0
libtpu: 0.0.40
codegen_flags: <defaults>
</compile_context>

<pallas_src>
import jax
import jax.numpy as jnp
import numpy as np
from jax.experimental import pallas as pl
from jax.experimental.pallas import tpu as pltpu


def _round_up(x, m):
    return (x + m - 1) // m * m


# -----------------------------------------------------------------------------
# Pallas kernel: per-ray world-space direction generation, tiled over N.
# -----------------------------------------------------------------------------
def _ray_dirs_kernel(scal_ref, xy_ref, dir_ref):
    b = pl.program_id(1)

    # Per-batch scalars from SMEM (scalar prefetch): cheap scalar-path reads,
    # sign already folded into R and 1/fx, 1/fy precomputed in the wrapper.
    r00 = scal_ref[b, 0]; r01 = scal_ref[b, 1]; r02 = scal_ref[b, 2]
    r10 = scal_ref[b, 3]; r11 = scal_ref[b, 4]; r12 = scal_ref[b, 5]
    r20 = scal_ref[b, 6]; r21 = scal_ref[b, 7]; r22 = scal_ref[b, 8]
    inv_fx = scal_ref[b, 9]; inv_fy = scal_ref[b, 10]
    px = scal_ref[b, 11]; py = scal_ref[b, 12]

    x = xy_ref[0:1, :]                      # (1, TN) lane-dense
    y = xy_ref[1:2, :]
    xc = (x - px) * inv_fx                  # camera-space x at depth 1
    yc = (y - py) * inv_fy                  # camera-space y at depth 1

    # dirs = (sign*R) @ [xc, yc, 1]  — one cam_to_world, no plane-2, no T.
    dir_ref[0] = jnp.concatenate(
        [r00 * xc + r01 * yc + r02,
         r10 * xc + r11 * yc + r12,
         r20 * xc + r21 * yc + r22], axis=0)          # (3, TN)


def _ray_directions_pallas(scalars, xy_cf, *, batch, n_pad, tile_n):
    num_tiles = n_pad // tile_n
    grid_spec = pltpu.PrefetchScalarGridSpec(
        num_scalar_prefetch=1,
        # batch is the inner grid axis so the shared xy tile is fetched once
        # per N tile (its block index depends only on the outer axis).
        grid=(num_tiles, batch),
        in_specs=[
            pl.BlockSpec((2, tile_n), lambda n, b, s: (0, n)),       # xy grid
        ],
        out_specs=pl.BlockSpec((1, 3, tile_n), lambda n, b, s: (b, 0, n)),
    )
    return pl.pallas_call(
        _ray_dirs_kernel,
        out_shape=jax.ShapeDtypeStruct((batch, 3, n_pad), jnp.float32),
        grid_spec=grid_spec,
        compiler_params=pltpu.CompilerParams(
            dimension_semantics=("parallel", "parallel")),
    )(scalars, xy_cf)


# -----------------------------------------------------------------------------
# Module-equivalent wrapper (grid construction, camera scalars, broadcasts).
# -----------------------------------------------------------------------------
def nerf_grid_raysampler_forward(R, T, focal, principal_point, *,
                                 min_x, max_x, min_y, max_y,
                                 image_width, image_height,
                                 n_pts_per_ray, min_depth, max_depth,
                                 negative_z=False, bounds=None,
                                 tile_n=8192):
    B = R.shape[0]
    H, W = image_height, image_width
    N = H * W
    R = R.astype(jnp.float32)
    T = T.astype(jnp.float32)
    focal = focal.astype(jnp.float32)
    principal_point = principal_point.astype(jnp.float32)

    # __init__ buffer: xy_grid via reversed meshgrid (x fastest along width).
    ys = jnp.linspace(min_y, max_y, H, dtype=jnp.float32)
    xs = jnp.linspace(min_x, max_x, W, dtype=jnp.float32)
    yy, xx = jnp.meshgrid(ys, xs, indexing="ij")
    xy_grid = jnp.stack([xx, yy], axis=-1)                    # (H, W, 2)

    # Camera centers / depth bounds (tiny per-batch scalars, plain JAX glue).
    centers = -jnp.einsum("bij,bj->bi", R, T)                 # == -T @ R^T
    if bounds is not None:
        min_depths = bounds[:, 0].astype(jnp.float32)
        max_depths = bounds[:, 1].astype(jnp.float32)
    else:
        distances = jnp.linalg.norm(centers, axis=-1)
        min_depths = jnp.clip(distances - min_depth, 0.0)
        max_depths = distances + max_depth

    # Pack per-batch scalars for the kernel: [sign*R (9), 1/fx, 1/fy, px, py, pad].
    sign = -1.0 if negative_z else 1.0                        # static fold, no in-kernel mul
    scalars = jnp.concatenate(
        [(sign * R).reshape(B, 9),
         1.0 / focal,
         principal_point,
         jnp.zeros((B, 3), jnp.float32)], axis=-1).astype(jnp.float32)   # (B, 16)

    # Channels-first, lane-dense ray layout, padded to a multiple of the tile.
    tn = min(int(tile_n), _round_up(N, 128))                  # multiple of 128
    n_pad = _round_up(N, tn)
    xy_cf = xy_grid.reshape(N, 2).T                           # (2, N)
    if n_pad != N:
        xy_cf = jnp.pad(xy_cf, ((0, 0), (0, n_pad - N)))

    dirs_cf = _ray_directions_pallas(scalars, xy_cf,
                                     batch=B, n_pad=n_pad, tile_n=tn)
    directions = dirs_cf[:, :, :N].transpose(0, 2, 1).reshape(B, H, W, 3)
    # TODO(synk): a channels-first consumer could take dirs_cf directly and skip
    #             this transpose (the only remaining non-broadcast HBM round trip).

    # origins = rays_plane_1_world - rays_directions_world == camera center:
    # a per-batch constant broadcast over all rays (no kernel write needed).
    origins = jnp.broadcast_to(centers[:, None, None, :], (B, H, W, 3))

    # lengths = linspace(min_d, max_d, n_pts) broadcast over all rays: pure
    # broadcast write — removes the dominant (~n_pts/(n_pts+6)) HBM traffic of
    # the previous kernel + transpose.  linspace handles n_pts_per_ray == 1.
    zs = jnp.linspace(min_depths, max_depths, n_pts_per_ray, axis=-1)  # (B, n_pts)
    lengths = jnp.broadcast_to(zs[:, None, None, :], (B, H, W, n_pts_per_ray))

    xys = jnp.broadcast_to(xy_grid[None], (B, H, W, 2))
    return origins, directions, lengths, xys


# -----------------------------------------------------------------------------
# Pure-JAX reference of the PyTorch semantics (long-way math, for verification).
# -----------------------------------------------------------------------------
def _reference(R, T, focal, pp, xy_grid, min_depths, max_depths,
               n_pts, negative_z):
    B = R.shape[0]
    H, W, _ = xy_grid.shape
    xy = xy_grid.reshape(-1, 2)
    o_l, d_l, z_l = [], [], []
    for b in range(B):
        fx, fy = focal[b, 0], focal[b, 1]
        px, py = pp[b, 0], pp[b, 1]
        xc = (xy[:, 0] - px) / fx
        yc = (xy[:, 1] - py) / fy
        p1 = jnp.stack([xc, yc, jnp.ones_like(xc)], axis=-1)     # depth-1 plane
        p2 = 2.0 * p1                                            # depth-2 plane
        w1 = (p1 - T[b]) @ R[b].T
        w2 = (p2 - T[b]) @ R[b].T
        d = w2 - w1
        o = w1 - d
        z = jnp.broadcast_to(
            jnp.linspace(min_depths[b], max_depths[b], n_pts), (xy.shape[0], n_pts))
        o_l.append(o); d_l.append(d * (-1.0 if negative_z else 1.0)); z_l.append(z)
    origins = jnp.stack(o_l).reshape(B, H, W, 3)
    dirs = jnp.stack(d_l).reshape(B, H, W, 3)
    lens = jnp.stack(z_l).reshape(B, H, W, n_pts)
    return origins, dirs, lens


if __name__ == "__main__":
    B, H, W, n_pts = 2, 16, 16, 8
    min_depth, max_depth = 0.5, 2.0
    negative_z = False

    key = jax.random.PRNGKey(0)
    k_t, k_ang, k_f, k_pp = jax.random.split(key, 4)

    # Deterministic synthetic cameras: rotations about the y-axis + jittered T.
    angles = jax.random.uniform(k_ang, (B,), minval=-0.4, maxval=0.4)
    c, s = jnp.cos(angles), jnp.sin(angles)
    zeros, ones = jnp.zeros_like(c), jnp.ones_like(c)
    R = jnp.stack([
        jnp.stack([c, zeros, s], axis=-1),
        jnp.stack([zeros, ones, zeros], axis=-1),
        jnp.stack([-s, zeros, c], axis=-1)], axis=1).astype(jnp.float32)  # (B,3,3)
    T = (jnp.array([[0.0, 0.0, 3.0]]) +
         0.3 * jax.random.normal(k_t, (B, 3))).astype(jnp.float32)
    focal = (1.2 + 0.1 * jax.random.normal(k_f, (B, 2))).astype(jnp.float32)
    principal_point = (0.05 * jax.random.normal(k_pp, (B, 2))).astype(jnp.float32)

    origins, directions, lengths, xys = nerf_grid_raysampler_forward(
        R, T, focal, principal_point,
        min_x=-1.0, max_x=1.0, min_y=-1.0, max_y=1.0,
        image_width=W, image_height=H,
        n_pts_per_ray=n_pts, min_depth=min_depth, max_depth=max_depth,
        negative_z=negative_z)
    jax.block_until_ready((origins, directions, lengths, xys))

    # Verify against a pure-JAX reference of the PyTorch math.
    ys = jnp.linspace(-1.0, 1.0, H, dtype=jnp.float32)
    xs = jnp.linspace(-1.0, 1.0, W, dtype=jnp.float32)
    yy, xx = jnp.meshgrid(ys, xs, indexing="ij")
    xy_grid = jnp.stack([xx, yy], axis=-1)
    centers = -jnp.einsum("bij,bj->bi", R, T)
    dist = jnp.linalg.norm(centers, axis=-1)
    min_depths = jnp.clip(dist - min_depth, 0.0)
    max_depths = dist + max_depth
    o_ref, d_ref, l_ref = _reference(R, T, focal, principal_point, xy_grid,
                                     min_depths, max_depths, n_pts, negative_z)

    assert origins.shape == (B, H, W, 3)
    assert directions.shape == (B, H, W, 3)
    assert lengths.shape == (B, H, W, n_pts)
    assert xys.shape == (B, H, W, 2)
    np.testing.assert_allclose(np.asarray(origins), np.asarray(o_ref),
                               rtol=1e-5, atol=1e-5)
    np.testing.assert_allclose(np.asarray(directions), np.asarray(d_ref),
                               rtol=1e-5, atol=1e-5)
    np.testing.assert_allclose(np.asarray(lengths), np.asarray(l_ref),
                               rtol=1e-5, atol=1e-5)
    print("KERNEL_OK")
</pallas_src>

<mosaic_0001>
module attributes {stable_mosaic.version = 11 : i64} {
  func.func @_ray_dirs_kernel(%arg0: i32, %arg1: i32, %arg2: memref<2x16xf32, #tpu.memory_space<smem>>, %arg3: memref<2x256xf32, #tpu.memory_space<vmem>>, %arg4: memref<1x3x256xf32, #tpu.memory_space<vmem>>) attributes {dimension_semantics = [#tpu.dimension_semantics<parallel>, #tpu.dimension_semantics<parallel>], iteration_bounds = array<i64: 1, 2>, scalar_prefetch = 1 : i64, scratch_operands = 0 : i64, tpu.core_type = #tpu.core_type<tc>, window_params = [{transform_indices = @transform_0, window_bounds = array<i64: 2, 256>}, {transform_indices = @transform_1, window_bounds = array<i64: 1, 3, 256>}]} {
    %0 = arith.index_cast %arg1 : i32 to index
    %c0 = arith.constant 0 : index
    %1 = memref.load %arg2[%0, %c0] : memref<2x16xf32, #tpu.memory_space<smem>>
    %2 = arith.index_cast %arg1 : i32 to index
    %c1 = arith.constant 1 : index
    %3 = memref.load %arg2[%2, %c1] : memref<2x16xf32, #tpu.memory_space<smem>>
    %4 = arith.index_cast %arg1 : i32 to index
    %c2 = arith.constant 2 : index
    %5 = memref.load %arg2[%4, %c2] : memref<2x16xf32, #tpu.memory_space<smem>>
    %6 = arith.index_cast %arg1 : i32 to index
    %c3 = arith.constant 3 : index
    %7 = memref.load %arg2[%6, %c3] : memref<2x16xf32, #tpu.memory_space<smem>>
    %8 = arith.index_cast %arg1 : i32 to index
    %c4 = arith.constant 4 : index
    %9 = memref.load %arg2[%8, %c4] : memref<2x16xf32, #tpu.memory_space<smem>>
    %10 = arith.index_cast %arg1 : i32 to index
    %c5 = arith.constant 5 : index
    %11 = memref.load %arg2[%10, %c5] : memref<2x16xf32, #tpu.memory_space<smem>>
    %12 = arith.index_cast %arg1 : i32 to index
    %c6 = arith.constant 6 : index
    %13 = memref.load %arg2[%12, %c6] : memref<2x16xf32, #tpu.memory_space<smem>>
    %14 = arith.index_cast %arg1 : i32 to index
    %c7 = arith.constant 7 : index
    %15 = memref.load %arg2[%14, %c7] : memref<2x16xf32, #tpu.memory_space<smem>>
    %16 = arith.index_cast %arg1 : i32 to index
    %c8 = arith.constant 8 : index
    %17 = memref.load %arg2[%16, %c8] : memref<2x16xf32, #tpu.memory_space<smem>>
    %18 = arith.index_cast %arg1 : i32 to index
    %c9 = arith.constant 9 : index
    %19 = memref.load %arg2[%18, %c9] : memref<2x16xf32, #tpu.memory_space<smem>>
    %20 = arith.index_cast %arg1 : i32 to index
    %c10 = arith.constant 10 : index
    %21 = memref.load %arg2[%20, %c10] : memref<2x16xf32, #tpu.memory_space<smem>>
    %22 = arith.index_cast %arg1 : i32 to index
    %c11 = arith.constant 11 : index
    %23 = memref.load %arg2[%22, %c11] : memref<2x16xf32, #tpu.memory_space<smem>>
    %24 = arith.index_cast %arg1 : i32 to index
    %c12 = arith.constant 12 : index
    %25 = memref.load %arg2[%24, %c12] : memref<2x16xf32, #tpu.memory_space<smem>>
    %c0_0 = arith.constant 0 : index
    %c0_1 = arith.constant 0 : index
    %26 = vector.load %arg3[%c0_0, %c0_1] : memref<2x256xf32, #tpu.memory_space<vmem>>, vector<1x256xf32>
    %c1_2 = arith.constant 1 : index
    %c0_3 = arith.constant 0 : index
    %27 = vector.load %arg3[%c1_2, %c0_3] : memref<2x256xf32, #tpu.memory_space<vmem>>, vector<1x256xf32>
    %28 = vector.broadcast %23 : f32 to vector<1x256xf32>
    %29 = arith.subf %26, %28 : vector<1x256xf32>
    %30 = vector.broadcast %19 : f32 to vector<1x256xf32>
    %31 = arith.mulf %29, %30 : vector<1x256xf32>
    %32 = vector.broadcast %25 : f32 to vector<1x256xf32>
    %33 = arith.subf %27, %32 : vector<1x256xf32>
    %34 = vector.broadcast %21 : f32 to vector<1x256xf32>
    %35 = arith.mulf %33, %34 : vector<1x256xf32>
    %36 = vector.broadcast %1 : f32 to vector<1x256xf32>
    %37 = arith.mulf %36, %31 : vector<1x256xf32>
    %38 = vector.broadcast %3 : f32 to vector<1x256xf32>
    %39 = arith.mulf %38, %35 : vector<1x256xf32>
    %40 = arith.addf %37, %39 : vector<1x256xf32>
    %41 = vector.broadcast %5 : f32 to vector<1x256xf32>
    %42 = arith.addf %40, %41 : vector<1x256xf32>
    %43 = vector.broadcast %7 : f32 to vector<1x256xf32>
    %44 = arith.mulf %43, %31 : vector<1x256xf32>
    %45 = vector.broadcast %9 : f32 to vector<1x256xf32>
    %46 = arith.mulf %45, %35 : vector<1x256xf32>
    %47 = arith.addf %44, %46 : vector<1x256xf32>
    %48 = vector.broadcast %11 : f32 to vector<1x256xf32>
    %49 = arith.addf %47, %48 : vector<1x256xf32>
    %50 = vector.broadcast %13 : f32 to vector<1x256xf32>
    %51 = arith.mulf %50, %31 : vector<1x256xf32>
    %52 = vector.broadcast %15 : f32 to vector<1x256xf32>
    %53 = arith.mulf %52, %35 : vector<1x256xf32>
    %54 = arith.addf %51, %53 : vector<1x256xf32>
    %55 = vector.broadcast %17 : f32 to vector<1x256xf32>
    %56 = arith.addf %54, %55 : vector<1x256xf32>
    %57 = tpu.concatenate %42, %49, %56 in 0 : vector<1x256xf32>, vector<1x256xf32>, vector<1x256xf32> -> vector<3x256xf32>
    %c0_4 = arith.constant 0 : index
    %c0_5 = arith.constant 0 : index
    %c0_6 = arith.constant 0 : index
    %58 = vector.load %arg4[%c0_4, %c0_5, %c0_6] : memref<1x3x256xf32, #tpu.memory_space<vmem>>, vector<1x3x256xf32>
    %59 = vector.shape_cast %58 : vector<1x3x256xf32> to vector<3x256xf32>
    %60 = vector.shape_cast %57 : vector<3x256xf32> to vector<1x3x256xf32>
    tpu.vector_store %arg4[%c0_4, %c0_5, %c0_6], %60 {strides = array<i32>} : memref<1x3x256xf32, #tpu.memory_space<vmem>>, vector<1x3x256xf32>,
    return
  }
  func.func @transform_0(%arg0: i32, %arg1: i32, %arg2: memref<2x16xf32, #tpu.memory_space<smem>>) -> (i32, i32) {
    %c0_i32 = arith.constant 0 : i32
    %c0_i32_0 = arith.constant 0 : i32
    return %c0_i32, %arg0 : i32, i32
  }
  func.func @transform_1(%arg0: i32, %arg1: i32, %arg2: memref<2x16xf32, #tpu.memory_space<smem>>) -> (i32, i32, i32) {
    %c0_i32 = arith.constant 0 : i32
    %c0_i32_0 = arith.constant 0 : i32
    return %arg1, %c0_i32, %arg0 : i32, i32, i32
  }
}

</mosaic_0001>

<llo_original>
// kernel: tpu_custom_call.1
$region0: #{tpu_custom_call.1}
  #allocation0 [shape = 'u32[]', space=smem, size = 0x4, offset = 0x4, fixed_abs, tag = 'smem constant byte address 0x4 - core index']
  #allocation1 [shape = 'u32[144,128]{1,0:T(1,128)}', space=vmem, size = 0x12000, scoped, tag = 'internal scratch']
  #allocation2 [shape = 's32[1]{0}', space=sflag, size = 0x4, scoped, tag = 'scoped memory for tpu_custom_call.1']
  #allocation3 [shape = 'u8[1024]{0}', space=smem, size = 0x400, scoped, tag = 'prefetched SMEM operand 0']
  %s0 = inlined_call_operand.hbm [shape: f32[2,16], index: 0, kind: input, shape index: {}]
  %s1 = inlined_call_operand.hbm [shape: f32[2,256], index: 1, kind: input, shape index: {}]
  %s2 = inlined_call_operand.vmem [shape: f32[2,3,256], index: 2, kind: output, shape index: {}]
  %s3 = sld [smem:[#allocation0]]
  $region41: #{tpu_custom_call.1} parent=0
    _
  %s5 = ssub.s32 1, %s3
  %s6 = scalar_select 0, %s5, %s3
  %8 = dma.hbm_to_smem %s0, 32, [#allocation3], [#allocation2]
  %9 = dma.done [#allocation2], 32
  %10 = sfence
  $region1: #{tpu_custom_call.1} parent=0
    #allocation4 [shape = 'u8[2048]{0}', space=vmem, size = 0x800, scoped, tag = 'input window, operand 1, single buffered']
    #allocation5 [shape = 's32[2]{0}', space=sflag, size = 0x8, scoped, tag = 'scoped memory for tpu_custom_call.1']
    %11 = vsyncpa [#allocation5], 0
    loop: start=0, step=1, limit=4
    $region2: #{tpu_custom_call.1} parent=1 // loop_pre_header
      _
    $region3: #{tpu_custom_call.1} parent=1 // loop_header
      %s13 = sphi 0, %s17
      %p14 = scmp.ge.s32.totalorder %s13, 4
      %s20 = sphi 0, %s32
      %s21 = sphi 0, %s28
      %s22 = sphi 0, %s20
      %s23 = sphi 0, %s21
      %s24 = sphi 0, %s22
      %s25 = sphi 0, %s23
      %s35 = sphi 0, %s37
      %s38 = sphi 0, %s35
      %s39 = sphi 0, %s38
      %s55 = sphi 0, %s39
      %s63 = sphi 0, %s65
      %s66 = sphi 0, %s63
      %s67 = sphi 0, %s66
      %s83 = sphi 0, %s67
    $region4: #{tpu_custom_call.1} parent=1 // loop_header_branch
      %16 = sbr.rel (%p14) target = $region8
    $region5: #{tpu_custom_call.1} parent=1 // loop_body
      %s18 = ssub.s32 %s13, 1
      %s19 = ssub.s32 %s13, 2
      %s26 = sadd.s32 1, %s21
      %p27 = scmp.ge.s32.totalorder %s26, 2
      %s28 = scalar_select %p27, 0, %s26
      %s29 = sadd.s32 1, %s20
      %s30 = scalar_select %p27, %s29, %s20
      %p31 = scmp.ge.s32.totalorder %s30, 1
      %s32 = scalar_select %p31, 0, %s30
      %s33 = ssub.s32 %s20, %s32
      %p34 = scmp.eq.s32.totalorder %s33, 0
      %s36 = sadd.s32 %s35, 1
      %s37 = scalar_select %p34, %s35, %s36
      %p40 = pneg %p34
      %p41 = scmp.eq.s32.totalorder %s13, 1
      %p42 = por %p40, %p41
      %p43 = scmp.ne.s32.totalorder %s35, %s38
      %p44 = scmp.eq.s32.totalorder %s13, 0
      %p45 = por %p43, %p44
      %p46 = scmp.ne.s32.totalorder %s35, %s38
      %p47 = scmp.eq.s32.totalorder %s18, 1
      %p48 = por %p46, %p47
      %p49 = scmp.ne.s32.totalorder %s38, %s39
      %p50 = scmp.eq.s32.totalorder %s18, 0
      %p51 = por %p49, %p50
      %p52 = scmp.ne.s32.totalorder %s38, %s39
      %p53 = scmp.eq.s32.totalorder %s19, 1
      %p54 = por %p52, %p53
      %p56 = scmp.ne.s32.totalorder %s39, %s55
      %p57 = scmp.eq.s32.totalorder %s19, 0
      %p58 = por %p56, %p57
      %s59 = ssub.s32 %s21, %s28
      %s60 = ssub.s32 %s20, %s32
      %s61 = sor.u32 %s59, %s60
      %p62 = scmp.eq.s32.totalorder %s61, 0
      %s64 = sadd.s32 %s63, 1
      %s65 = scalar_select %p62, %s63, %s64
      %p68 = pneg %p62
      %p69 = scmp.eq.s32.totalorder %s13, 1
      %p70 = por %p68, %p69
      %p71 = scmp.ne.s32.totalorder %s63, %s66
      %p72 = scmp.eq.s32.totalorder %s13, 0
      %p73 = por %p71, %p72
      %p74 = scmp.ne.s32.totalorder %s63, %s66
      %p75 = scmp.eq.s32.totalorder %s18, 1
      %p76 = por %p74, %p75
      %p77 = scmp.ne.s32.totalorder %s66, %s67
      %p78 = scmp.eq.s32.totalorder %s18, 0
      %p79 = por %p77, %p78
      %p80 = scmp.ne.s32.totalorder %s66, %s67
      %p81 = scmp.eq.s32.totalorder %s19, 1
      %p82 = por %p80, %p81
      %p84 = scmp.ne.s32.totalorder %s67, %s83
      %p85 = scmp.eq.s32.totalorder %s19, 0
      %p86 = por %p84, %p85
      %p87 = scmp.le.s32.totalorder 1, %s13
      %p88 = scmp.lt.s32.totalorder %s13, 3
      %p89 = pnand %p87, %p88
      %p90 = pneg %p89
      // Predicated region
      $region9: #{tpu_custom_call.1} parent=5 // pred_check
        _
      $region10: #{tpu_custom_call.1} parent=5 // pred_check_branch
        %92 = sbr.rel (%p89) target = $region12
      $region11: #{tpu_custom_call.1} parent=5 // pred_region
        %s93 = ssub.s32 %s13, 1
        // Predicated region
        $region13: #{tpu_custom_call.1} parent=11 // pred_check
          %p94 = pneg %p51
        $region14: #{tpu_custom_call.1} parent=11 // pred_check_branch
          %96 = sbr.rel (%p94) target = $region16
        $region15: #{tpu_custom_call.1} parent=11 // pred_region
          %s97 = smul.u32 2, %s22
          %s99 = ssub.s32 64, 64
          %100 = vsyncadd [#allocation5], %s99
          %s101 = smul.addr %s97, 32
          %s102 = scalar_lea.hbm %s1, %s101
          %s104 = sshll.u32 [#allocation4], 4
          %s105 = int_to_ptr.vmem [resolvable:$true] %s104
          %107 = dma.hbm_to_vmem [thread:$0]  %s102, 64, %s105, [#allocation5]
        $region16: #{tpu_custom_call.1} parent=11 // pred_fallthru
          _
      $region12: #{tpu_custom_call.1} parent=5 // pred_fallthru
        _
      %p108 = scmp.lt.s32.totalorder %s13, 2
      // Predicated region
      $region17: #{tpu_custom_call.1} parent=5 // pred_check
        %p109 = pneg %p108
      $region18: #{tpu_custom_call.1} parent=5 // pred_check_branch
        %111 = sbr.rel (%p109) target = $region20
      $region19: #{tpu_custom_call.1} parent=5 // pred_region
        _
      $region20: #{tpu_custom_call.1} parent=5 // pred_fallthru
        _
      %p112 = scmp.le.s32.totalorder 1, %s13
      %p113 = scmp.lt.s32.totalorder %s13, 3
      %p114 = pnand %p112, %p113
      %p115 = pneg %p114
      // Predicated region
      $region21: #{tpu_custom_call.1} parent=5 // pred_check
        _
      $region22: #{tpu_custom_call.1} parent=5 // pred_check_branch
        %117 = sbr.rel (%p114) target = $region24
      $region23: #{tpu_custom_call.1} parent=5 // pred_region
        %s118 = ssub.s32 %s13, 1
        // Predicated region
        $region25: #{tpu_custom_call.1} parent=23 // pred_check
          %p119 = pneg %p51
        $region26: #{tpu_custom_call.1} parent=23 // pred_check_branch
          %121 = sbr.rel (%p119) target = $region28
        $region27: #{tpu_custom_call.1} parent=23 // pred_region
          %122 = dma.done [#allocation5], 64
        $region28: #{tpu_custom_call.1} parent=23 // pred_fallthru
          _
        %p123 = pneg %p51
        %p124 = pneg %p48
        %p125 = pneg %p79
        %p126 = pneg %p76
        %s127 = smul.u32 2, %s22
        %p128 = scmp.lt.s32.totalorder %s23, 1
        %s129 = scalar_select %p128, %s23, 1
        %p130 = scmp.lt.s32.totalorder %s127, 1
        %s131 = scalar_select %p130, %s127, 1
        %s132 = smul.addr %s129, 2
        %s133 = sadd.s32 %s131, %s132
        %s134 = smul.addr %s133, 4
        %s135 = scalar_lea.vmem %s2, %s134
        %s136 = smul.u32 2, %s22
        %s137 = smul.u32 2, %s22
        %p138 = scmp.lt.s32.totalorder %s23, 1
        %s139 = scalar_select %p138, %s23, 1
        %p140 = scmp.lt.s32.totalorder %s137, 1
        %s141 = scalar_select %p140, %s137, 1
        %s142 = smul.addr %s139, 2
        %s143 = sadd.s32 %s141, %s142
        %s144 = smul.addr %s143, 4
        %s145 = scalar_lea.vmem %s2, %s144
        %s146 = smul.u32 2, %s22
        %s147 = smul.u32 %s23, 128
        %s148 = sld [smem:[#allocation3 + %s147]]
        %s149 = sadd.s32 %s147, 1
        %s150 = sld [smem:[#allocation3 + %s149]]
        %s151 = sadd.s32 %s147, 2
        %s152 = sld [smem:[#allocation3 + %s151]]
        %s153 = sadd.s32 %s147, 3
        %s154 = sld [smem:[#allocation3 + %s153]]
        %s155 = sadd.s32 %s147, 4
        %s156 = sld [smem:[#allocation3 + %s155]]
        %s157 = sadd.s32 %s147, 5
        %s158 = sld [smem:[#allocation3 + %s157]]
        %s159 = sadd.s32 %s147, 6
        %s160 = sld [smem:[#allocation3 + %s159]]
        %s161 = sadd.s32 %s147, 7
        %s162 = sld [smem:[#allocation3 + %s161]]
        %s163 = sadd.s32 %s147, 8
        %s164 = sld [smem:[#allocation3 + %s163]]
        %s165 = sadd.s32 %s147, 9
        %s166 = sld [smem:[#allocation3 + %s165]]
        %s167 = sadd.s32 %s147, 10
        %s168 = sld [smem:[#allocation3 + %s167]]
        %s169 = sadd.s32 %s147, 11
        %s170 = sld [smem:[#allocation3 + %s169]]
        %s171 = sadd.s32 %s147, 12
        %s172 = sld [smem:[#allocation3 + %s171]]
        %v173 = vld [vmem:[#allocation4] ss:$2 sm:$0x3]
        %s174 = scalar_lea.vmem [#allocation4], 1
        %v175 = vld [vmem:[%s174] ss:$2 sm:$0x3]
        %v176 = vstv %s170
        %v177 = vsub.f32 %v173, %v176
        %v178 = vstv %s166
        %v179 = vmul.f32 %v177, %v178
        %v180 = vstv %s172
        %v181 = vsub.f32 %v175, %v180
        %v182 = vstv %s168
        %v183 = vmul.f32 %v181, %v182
        %v184 = vstv %s148
        %v185 = vmul.f32 %v184, %v179
        %v186 = vstv %s150
        %v187 = vmul.f32 %v186, %v183
        %v188 = vadd.f32 %v185, %v187
        %v189 = vstv %s152
        %v190 = vadd.f32 %v188, %v189
        %v191 = vstv %s154
        %v192 = vmul.f32 %v191, %v179
        %v193 = vstv %s156
        %v194 = vmul.f32 %v193, %v183
        %v195 = vadd.f32 %v192, %v194
        %v196 = vstv %s158
        %v197 = vadd.f32 %v195, %v196
        %v198 = vstv %s160
        %v199 = vmul.f32 %v198, %v179
        %v200 = vstv %s162
        %v201 = vmul.f32 %v200, %v183
        %v202 = vadd.f32 %v199, %v201
        %v203 = vstv %s164
        %v204 = vadd.f32 %v202, %v203
        %v206 = vlaneseq
        %v207 = vshrl.u32 %v206, 7
        %v208 = vsub.s32 0, %v207
        %v209 = vrot.slane %v190, %v208
        %v210 = vlaneseq
        %v211 = vshrl.u32 %v210, 7
        %v212 = vsub.s32 1, %v211
        %v213 = vrot.slane %v190, %v212
        %v217 = vlaneseq
        %v218 = vshrl.u32 %v217, 7
        %v219 = vsub.s32 0, %v218
        %v220 = vrot.slane %v197, %v219
        %v221 = vlaneseq
        %v222 = vshrl.u32 %v221, 7
        %v223 = vsub.s32 1, %v222
        %v224 = vrot.slane %v197, %v223
        %v228 = vlaneseq
        %v229 = vshrl.u32 %v228, 7
        %v230 = vsub.s32 0, %v229
        %v231 = vrot.slane %v204, %v230
        %v232 = vlaneseq
        %v233 = vshrl.u32 %v232, 7
        %v234 = vsub.s32 1, %v233
        %v235 = vrot.slane %v204, %v234
        %vm238 = vcmask 1040384
        %v239 = vsel %vm238, %v209, %v220
        %v240 = vsel %vm238, %v213, %v224
        %vm241 = vcmask 1041408
        %v242 = vsel %vm241, %v239, %v231
        %v243 = vsel %vm241, %v240, %v235
        %v246 = vcombine.low %v242, %v243
        %248 = vst [vmem:[%s145] sm:$0x77] %v246
        %s249 = smul.u32 2, %s22
        %p250 = scmp.lt.s32.totalorder %s23, 1
        %s251 = scalar_select %p250, %s23, 1
        %p252 = scmp.lt.s32.totalorder %s249, 1
        %s253 = scalar_select %p252, %s249, 1
        %s254 = smul.addr %s251, 2
        %s255 = sadd.s32 %s253, %s254
        %s256 = smul.addr %s255, 4
        %s257 = scalar_lea.vmem %s2, %s256
        // Predicated region
        $region29: #{tpu_custom_call.1} parent=23 // pred_check
          %p258 = pneg %p76
        $region30: #{tpu_custom_call.1} parent=23 // pred_check_branch
          %260 = sbr.rel (%p258) target = $region32
        $region31: #{tpu_custom_call.1} parent=23 // pred_region
          %s261 = smul.u32 2, %s22
        $region32: #{tpu_custom_call.1} parent=23 // pred_fallthru
          _
      $region24: #{tpu_custom_call.1} parent=5 // pred_fallthru
        _
      %p262 = scmp.le.s32.totalorder 2, %s13
      // Predicated region
      $region33: #{tpu_custom_call.1} parent=5 // pred_check
        %p263 = pneg %p262
      $region34: #{tpu_custom_call.1} parent=5 // pred_check_branch
        %265 = sbr.rel (%p263) target = $region36
      $region35: #{tpu_custom_call.1} parent=5 // pred_region
        %s266 = ssub.s32 %s13, 2
        // Predicated region
        $region37: #{tpu_custom_call.1} parent=35 // pred_check
          %p267 = pneg %p82
        $region38: #{tpu_custom_call.1} parent=35 // pred_check_branch
          %269 = sbr.rel (%p267) target = $region40
        $region39: #{tpu_custom_call.1} parent=35 // pred_region
          %s270 = smul.u32 2, %s24
          %p271 = scmp.lt.s32.totalorder %s25, 1
          %s272 = scalar_select %p271, %s25, 1
          %p273 = scmp.lt.s32.totalorder %s270, 1
          %s274 = scalar_select %p273, %s270, 1
          %s275 = smul.addr %s272, 2
          %s276 = sadd.s32 %s274, %s275
          %s277 = smul.addr %s276, 4
          %s278 = scalar_lea.vmem %s2, %s277
        $region40: #{tpu_custom_call.1} parent=35 // pred_fallthru
          _
      $region36: #{tpu_custom_call.1} parent=5 // pred_fallthru
        _
    $region6: #{tpu_custom_call.1} parent=1 // loop_footer
      %s17 = sadd.s32 1, %s13
    $region7: #{tpu_custom_call.1} parent=1 // loop_footer_branch
      %12 = sbr.rel target = $region3
    $region8: #{tpu_custom_call.1} parent=1 // loop_exit
      _
    %279 = vsyncpa [#allocation5], 1
    %s280 = scalar_lea.sflag [#allocation5], 1
    %281 = vsyncpa %s280, 1

</llo_original>
